<compile_context>
chip_gen: v5e
topology: v5e:2x2
jax: 0.10.0
libtpu: 0.0.40
codegen_flags: <defaults>
</compile_context>

<pallas_src>
import functools

import jax
import jax.numpy as jnp
from jax import lax
from jax.experimental import pallas as pl
from jax.experimental.pallas import tpu as pltpu

_IGNORE_INDEX = -100  # PyTorch F.cross_entropy default


def _ce_tile_sum_kernel(logits_ref, target_ref, out_ref, *,
                        n_rows, tn, ignore_index, use_bf16_exp):
    """Masked per-tile sum of row cross-entropies for one (tn, C) logits tile."""
    i = pl.program_id(0)

    x = logits_ref[...].astype(jnp.float32)            # (tn, C) upcast in-kernel
    tgt = target_ref[...]                                # (tn, 1) int32

    # numerically stable log-softmax pieces; only xm needs to stay live
    m = jnp.max(x, axis=-1, keepdims=True)               # (tn, 1)
    xm = x - m
    if use_bf16_exp:
        # bf16 EUP path (v6e/v7x only): ~2x exp throughput, ~2-3 digits lost
        ex = jnp.exp(xm.astype(jnp.bfloat16)).astype(jnp.float32)
    else:
        ex = jnp.exp(xm)
    log_sum = jnp.log(jnp.sum(ex, axis=-1, keepdims=True))          # (tn, 1)

    # gather xm[target] via iota==target one-hot select (VPU-only, no gather)
    cls = lax.broadcasted_iota(jnp.int32, xm.shape, 1)               # (tn, C)
    tgt_xm = jnp.sum(jnp.where(cls == tgt, xm, 0.0), axis=-1, keepdims=True)

    row_loss = log_sum - tgt_xm       # == logsumexp(x) - x[target]    (tn, 1)

    # SELECT (not multiply): garbage rows in the partial last block may be NaN/Inf
    row_idx = i * tn + lax.broadcasted_iota(jnp.int32, (tn, 1), 0)
    valid = jnp.logical_and(row_idx < n_rows, tgt != ignore_index)
    tile_sum = jnp.sum(jnp.where(valid, row_loss, 0.0))

    # lane-dense (8, 128) output block: tile_sum at [0, 0], zeros elsewhere
    r = lax.broadcasted_iota(jnp.int32, (8, 128), 0)
    c = lax.broadcasted_iota(jnp.int32, (8, 128), 1)
    out_ref[...] = jnp.where(jnp.logical_and(r == 0, c == 0), tile_sum, 0.0)


def _vmem_limit_bytes():
    """Per-generation VMEM budget (v7x: 64 MiB physical; v5e/v6e: 128 MiB)."""
    try:
        phys = pltpu.get_tpu_info().vmem_capacity_bytes
    except Exception:
        phys = 64 << 20  # conservative fallback (v7x)
    return int(min(phys * 3 // 4, 96 << 20))


def _choose_tn(n, c, itemsize, vmem_limit):
    """Row tile sized by bytes: double-buffered input + ~5 full-tile f32 temps."""
    # per-row VMEM footprint: 2x input buffer + {x, xm, ex, iota, select} f32/i32
    per_row = (2 * itemsize + 5 * 4) * c + 16
    tn = int(vmem_limit * 0.6) // max(1, per_row)
    # also target ~8 MiB of input per buffer (amortizes the ~0.35 us/step overhead)
    tn = min(tn, (8 << 20) // max(1, c * itemsize))
    tn = max(8, (tn // 8) * 8)
    # keep >=2 (>=4 when N allows) grid steps: v7x 2-TC sharding of the
    # "parallel" axis + DMA/compute overlap need more than one step
    n8 = -(-n // 8) * 8
    if n8 >= 64:
        tn = min(tn, max(8, (n8 // 4) // 8 * 8))
    elif n8 >= 16:
        tn = min(tn, max(8, (n8 // 2) // 8 * 8))
    return min(tn, n8)


def _is_v5():
    try:
        return "v5" in jax.devices()[0].device_kind.lower()
    except Exception:
        return False


def paac_loss(contrast_logits, contrast_target, *, tn=None, use_bf16_exp=False,
              ignore_index=_IGNORE_INDEX):
    """Mean cross-entropy (== F.cross_entropy(logits, target.long())) via Pallas.

    logits: (N, C) float.  Feed bf16 from HBM when the producer can emit it (the
    kernel upcasts to f32 internally) — halves the binding HBM traffic on v5e/v6e.
    target: (N,) class indices (any int/float dtype; truncated like .long()).
    """
    N, C = contrast_logits.shape
    itemsize = jnp.dtype(contrast_logits.dtype).itemsize
    vmem_limit = _vmem_limit_bytes()
    if tn is None:
        tn = _choose_tn(N, C, itemsize, vmem_limit)
    if use_bf16_exp and _is_v5():
        use_bf16_exp = False  # v5e has no bf16 EUP/VPU: the casts are pure overhead

    tgt = contrast_target.astype(jnp.int32)        # == .long() truncation semantics
    tgt2d = tgt.reshape(N, 1)

    num_tiles = -(-N // tn)                         # cdiv; no wrapper-side padding

    tile_sums = pl.pallas_call(
        functools.partial(_ce_tile_sum_kernel, n_rows=N, tn=tn,
                          ignore_index=ignore_index, use_bf16_exp=use_bf16_exp),
        out_shape=jax.ShapeDtypeStruct((num_tiles * 8, 128), jnp.float32),
        grid_spec=pltpu.PrefetchScalarGridSpec(
            num_scalar_prefetch=0,
            grid=(num_tiles,),
            in_specs=[
                pl.BlockSpec((tn, C), lambda i: (i, 0)),   # logits tile
                pl.BlockSpec((tn, 1), lambda i: (i, 0)),   # target tile
            ],
            out_specs=pl.BlockSpec((8, 128), lambda i: (i, 0)),  # per-tile sum block
        ),
        compiler_params=pltpu.CompilerParams(
            # independent tiles: lets the megacore (v7x: 2 TCs) shard the grid
            dimension_semantics=("parallel",),
            vmem_limit_bytes=vmem_limit,
        ),
    )(contrast_logits, tgt2d)

    # tiny O(num_tiles*1024) reduce + O(N) valid count outside the kernel
    valid = tgt != ignore_index
    denom = jnp.sum(valid).astype(jnp.float32)      # == N when no ignore labels
    return jnp.sum(tile_sums) / denom


def _reference_loss(logits, target, ignore_index=_IGNORE_INDEX):
    # pure-JAX reference of F.cross_entropy(logits, target.long()), reduction='mean'
    t = target.astype(jnp.int32)
    logp = jax.nn.log_softmax(logits.astype(jnp.float32), axis=-1)
    safe_t = jnp.clip(t, 0, logits.shape[-1] - 1)
    picked = jnp.take_along_axis(logp, safe_t[:, None], axis=-1)[:, 0]
    valid = t != ignore_index
    return -jnp.sum(jnp.where(valid, picked, 0.0)) / jnp.sum(valid)


if __name__ == "__main__":
    key = jax.random.PRNGKey(0)
    k1, k2, k3, k4 = jax.random.split(key, 4)

    # (1) shapes consistent with PAAC: (num_samples, num_prototypes)
    N, C = 16, 32
    contrast_logits = jax.random.normal(k1, (N, C), dtype=jnp.float32)
    contrast_target = jax.random.randint(k2, (N,), 0, C).astype(jnp.float32)  # float, .long()'ed like PyTorch

    loss = jax.block_until_ready(paac_loss(contrast_logits, contrast_target))
    ref = _reference_loss(contrast_logits, contrast_target)
    assert jnp.allclose(loss, ref, atol=1e-5, rtol=1e-5), (loss, ref)

    # (2) N not divisible by the tile -> exercises the partial-last-block path (no pad)
    N2, C2 = 13, 32
    logits2 = jax.random.normal(k3, (N2, C2), dtype=jnp.float32)
    target2 = jax.random.randint(k4, (N2,), 0, C2).astype(jnp.float32)
    loss2 = jax.block_until_ready(paac_loss(logits2, target2))
    ref2 = _reference_loss(logits2, target2)
    assert jnp.allclose(loss2, ref2, atol=1e-5, rtol=1e-5), (loss2, ref2)

    print("KERNEL_OK")
</pallas_src>

<mosaic_0001>
module attributes {stable_mosaic.version = 11 : i64} {
  func.func @_ce_tile_sum_kernel(%arg0: i32, %arg1: memref<8x32xf32, #tpu.memory_space<vmem>>, %arg2: memref<8x1xi32, #tpu.memory_space<vmem>>, %arg3: memref<8x128xf32, #tpu.memory_space<vmem>>) attributes {dimension_semantics = [#tpu.dimension_semantics<parallel>], iteration_bounds = array<i64: 2>, scalar_prefetch = 0 : i64, scratch_operands = 0 : i64, tpu.core_type = #tpu.core_type<tc>, window_params = [{transform_indices = @transform_0, window_bounds = array<i64: 8, 32>}, {transform_indices = @transform_1, window_bounds = array<i64: 8, 1>}, {transform_indices = @transform_2, window_bounds = array<i64: 8, 128>}]} {
    %c0 = arith.constant 0 : index
    %c0_0 = arith.constant 0 : index
    %0 = vector.load %arg1[%c0, %c0_0] : memref<8x32xf32, #tpu.memory_space<vmem>>, vector<8x32xf32>
    %c0_1 = arith.constant 0 : index
    %c0_2 = arith.constant 0 : index
    %1 = vector.load %arg2[%c0_1, %c0_2] : memref<8x1xi32, #tpu.memory_space<vmem>>, vector<8x1xi32>
    %cst = arith.constant dense<0xFF800000> : vector<8xf32>
    %2 = vector.multi_reduction <maximumf>, %0, %cst [1] : vector<8x32xf32> to vector<8xf32>
    %3 = vector.shape_cast %2 : vector<8xf32> to vector<8x1xf32>
    %4 = vector.broadcast %3 : vector<8x1xf32> to vector<8x32xf32>
    %5 = arith.subf %0, %4 : vector<8x32xf32>
    %6 = math.exp %5 : vector<8x32xf32>
    %cst_3 = arith.constant dense<0.000000e+00> : vector<8xf32>
    %7 = vector.multi_reduction <add>, %6, %cst_3 [1] : vector<8x32xf32> to vector<8xf32>
    %8 = vector.shape_cast %7 : vector<8xf32> to vector<8x1xf32>
    %9 = math.log %8 : vector<8x1xf32>
    %10 = tpu.iota {dimensions = array<i32: 1>} : vector<8x32xi32>
    %11 = vector.broadcast %1 : vector<8x1xi32> to vector<8x32xi32>
    %12 = arith.cmpi eq, %10, %11 : vector<8x32xi32>
    %cst_4 = arith.constant 0.000000e+00 : f32
    %13 = vector.broadcast %cst_4 : f32 to vector<8x32xf32>
    %14 = arith.select %12, %5, %13 : vector<8x32xi1>, vector<8x32xf32>
    %cst_5 = arith.constant dense<0.000000e+00> : vector<8xf32>
    %15 = vector.multi_reduction <add>, %14, %cst_5 [1] : vector<8x32xf32> to vector<8xf32>
    %16 = vector.shape_cast %15 : vector<8xf32> to vector<8x1xf32>
    %17 = arith.subf %9, %16 : vector<8x1xf32>
    %c8_i32 = arith.constant 8 : i32
    %18 = arith.muli %arg0, %c8_i32 : i32
    %19 = tpu.iota {dimensions = array<i32: 0>} : vector<8x1xi32>
    %20 = vector.broadcast %18 : i32 to vector<8x1xi32>
    %21 = arith.addi %20, %19 : vector<8x1xi32>
    %c16_i32 = arith.constant 16 : i32
    %22 = vector.broadcast %c16_i32 : i32 to vector<8x1xi32>
    %23 = arith.cmpi slt, %21, %22 : vector<8x1xi32>
    %c-100_i32 = arith.constant -100 : i32
    %24 = vector.broadcast %c-100_i32 : i32 to vector<8x1xi32>
    %25 = arith.cmpi ne, %1, %24 : vector<8x1xi32>
    %26 = arith.andi %23, %25 : vector<8x1xi1>
    %cst_6 = arith.constant 0.000000e+00 : f32
    %27 = vector.broadcast %cst_6 : f32 to vector<8x1xf32>
    %28 = arith.select %26, %17, %27 : vector<8x1xi1>, vector<8x1xf32>
    %29 = vector.shape_cast %28 : vector<8x1xf32> to vector<1x8x1xf32>
    %cst_7 = arith.constant dense<0.000000e+00> : vector<1xf32>
    %30 = vector.multi_reduction <add>, %29, %cst_7 [1, 2] : vector<1x8x1xf32> to vector<1xf32>
    %31 = vector.shape_cast %30 : vector<1xf32> to vector<1x1x1xf32>
    %32 = vector.extract %31[0, 0, 0] : f32 from vector<1x1x1xf32>
    %33 = tpu.iota {dimensions = array<i32: 0>} : vector<8x128xi32>
    %34 = tpu.iota {dimensions = array<i32: 1>} : vector<8x128xi32>
    %c0_i32 = arith.constant 0 : i32
    %35 = vector.broadcast %c0_i32 : i32 to vector<8x128xi32>
    %36 = arith.cmpi eq, %33, %35 : vector<8x128xi32>
    %c0_i32_8 = arith.constant 0 : i32
    %37 = vector.broadcast %c0_i32_8 : i32 to vector<8x128xi32>
    %38 = arith.cmpi eq, %34, %37 : vector<8x128xi32>
    %39 = arith.andi %36, %38 : vector<8x128xi1>
    %cst_9 = arith.constant 0.000000e+00 : f32
    %40 = vector.broadcast %32 : f32 to vector<8x128xf32>
    %41 = vector.broadcast %cst_9 : f32 to vector<8x128xf32>
    %42 = arith.select %39, %40, %41 : vector<8x128xi1>, vector<8x128xf32>
    %c0_10 = arith.constant 0 : index
    %c0_11 = arith.constant 0 : index
    %43 = vector.load %arg3[%c0_10, %c0_11] : memref<8x128xf32, #tpu.memory_space<vmem>>, vector<8x128xf32>
    tpu.vector_store %arg3[%c0_10, %c0_11], %42 {strides = array<i32>} : memref<8x128xf32, #tpu.memory_space<vmem>>, vector<8x128xf32>,
    return
  }
  func.func @transform_0(%arg0: i32) -> (i32, i32) {
    %c0_i32 = arith.constant 0 : i32
    %c0_i32_0 = arith.constant 0 : i32
    return %arg0, %c0_i32 : i32, i32
  }
  func.func @transform_1(%arg0: i32) -> (i32, i32) {
    %c0_i32 = arith.constant 0 : i32
    %c0_i32_0 = arith.constant 0 : i32
    return %arg0, %c0_i32 : i32, i32
  }
  func.func @transform_2(%arg0: i32) -> (i32, i32) {
    %c0_i32 = arith.constant 0 : i32
    %c0_i32_0 = arith.constant 0 : i32
    return %arg0, %c0_i32 : i32, i32
  }
}

</mosaic_0001>

<llo_original>
// kernel: tpu_custom_call.1
$region0: #{tpu_custom_call.1}
  #allocation0 [shape = 'u32[]', space=smem, size = 0x4, offset = 0x4, fixed_abs, tag = 'smem constant byte address 0x4 - core index']
  #allocation1 [shape = 'u32[72,128]{1,0:T(1,128)}', space=vmem, size = 0x9000, scoped, tag = 'internal scratch']
  %s0 = inlined_call_operand.vmem [shape: f32[16,32], index: 0, kind: input, shape index: {}]
  %s1 = inlined_call_operand.vmem [shape: s32[16,1], index: 1, kind: input, shape index: {}]
  %s2 = inlined_call_operand.hbm [shape: f32[16,128], index: 2, kind: output, shape index: {}]
  %s3 = sld [smem:[#allocation0]]
  $region41: #{tpu_custom_call.1} parent=0
    _
  %s5 = ssub.s32 1, %s3
  %s6 = scalar_select 0, %s5, %s3
  $region1: #{tpu_custom_call.1} parent=0
    #allocation2 [shape = 'u8[8192]{0}', space=vmem, size = 0x2000, scoped, tag = 'output window, operand 0']
    #allocation3 [shape = 's32[2]{0}', space=sflag, size = 0x8, scoped, tag = 'scoped memory for tpu_custom_call.1']
    %7 = vsyncpa [#allocation3], 0
    %s8 = scalar_lea.sflag [#allocation3], 1
    %9 = vsyncpa %s8, 0
    loop: start=0, step=1, limit=4
    $region2: #{tpu_custom_call.1} parent=1 // loop_pre_header
      _
    $region3: #{tpu_custom_call.1} parent=1 // loop_header
      %s11 = sphi 0, %s15
      %p12 = scmp.ge.s32.totalorder %s11, 4
      %s21 = sphi 0, %s23
      %s24 = sphi 0, %s21
      %s25 = sphi 0, %s24
      %s41 = sphi 0, %s25
      %s47 = sphi 0, %s49
      %s50 = sphi 0, %s47
      %s51 = sphi 0, %s50
      %s67 = sphi 0, %s51
      %s73 = sphi 0, %s75
      %s76 = sphi 0, %s73
      %s77 = sphi 0, %s76
      %s93 = sphi 0, %s77
    $region4: #{tpu_custom_call.1} parent=1 // loop_header_branch
      %14 = sbr.rel (%p12) target = $region8
    $region5: #{tpu_custom_call.1} parent=1 // loop_body
      %s16 = ssub.s32 %s11, 1
      %s17 = ssub.s32 %s11, 2
      %s18 = sadd.s32 %s11, 1
      %s19 = ssub.s32 %s11, %s18
      %p20 = scmp.eq.s32.totalorder %s19, 0
      %s22 = sadd.s32 %s21, 1
      %s23 = scalar_select %p20, %s21, %s22
      %p26 = pneg %p20
      %p27 = scmp.eq.s32.totalorder %s11, 1
      %p28 = por %p26, %p27
      %p29 = scmp.ne.s32.totalorder %s21, %s24
      %p30 = scmp.eq.s32.totalorder %s11, 0
      %p31 = por %p29, %p30
      %p32 = scmp.ne.s32.totalorder %s21, %s24
      %p33 = scmp.eq.s32.totalorder %s16, 1
      %p34 = por %p32, %p33
      %p35 = scmp.ne.s32.totalorder %s24, %s25
      %p36 = scmp.eq.s32.totalorder %s16, 0
      %p37 = por %p35, %p36
      %p38 = scmp.ne.s32.totalorder %s24, %s25
      %p39 = scmp.eq.s32.totalorder %s17, 1
      %p40 = por %p38, %p39
      %p42 = scmp.ne.s32.totalorder %s25, %s41
      %p43 = scmp.eq.s32.totalorder %s17, 0
      %p44 = por %p42, %p43
      %s45 = ssub.s32 %s11, %s18
      %p46 = scmp.eq.s32.totalorder %s45, 0
      %s48 = sadd.s32 %s47, 1
      %s49 = scalar_select %p46, %s47, %s48
      %p52 = pneg %p46
      %p53 = scmp.eq.s32.totalorder %s11, 1
      %p54 = por %p52, %p53
      %p55 = scmp.ne.s32.totalorder %s47, %s50
      %p56 = scmp.eq.s32.totalorder %s11, 0
      %p57 = por %p55, %p56
      %p58 = scmp.ne.s32.totalorder %s47, %s50
      %p59 = scmp.eq.s32.totalorder %s16, 1
      %p60 = por %p58, %p59
      %p61 = scmp.ne.s32.totalorder %s50, %s51
      %p62 = scmp.eq.s32.totalorder %s16, 0
      %p63 = por %p61, %p62
      %p64 = scmp.ne.s32.totalorder %s50, %s51
      %p65 = scmp.eq.s32.totalorder %s17, 1
      %p66 = por %p64, %p65
      %p68 = scmp.ne.s32.totalorder %s51, %s67
      %p69 = scmp.eq.s32.totalorder %s17, 0
      %p70 = por %p68, %p69
      %s71 = ssub.s32 %s11, %s18
      %p72 = scmp.eq.s32.totalorder %s71, 0
      %s74 = sadd.s32 %s73, 1
      %s75 = scalar_select %p72, %s73, %s74
      %p78 = pneg %p72
      %p79 = scmp.eq.s32.totalorder %s11, 1
      %p80 = por %p78, %p79
      %p81 = scmp.ne.s32.totalorder %s73, %s76
      %p82 = scmp.eq.s32.totalorder %s11, 0
      %p83 = por %p81, %p82
      %p84 = scmp.ne.s32.totalorder %s73, %s76
      %p85 = scmp.eq.s32.totalorder %s16, 1
      %p86 = por %p84, %p85
      %p87 = scmp.ne.s32.totalorder %s76, %s77
      %p88 = scmp.eq.s32.totalorder %s16, 0
      %p89 = por %p87, %p88
      %p90 = scmp.ne.s32.totalorder %s76, %s77
      %p91 = scmp.eq.s32.totalorder %s17, 1
      %p92 = por %p90, %p91
      %p94 = scmp.ne.s32.totalorder %s77, %s93
      %p95 = scmp.eq.s32.totalorder %s17, 0
      %p96 = por %p94, %p95
      %p97 = scmp.le.s32.totalorder 1, %s11
      %p98 = scmp.lt.s32.totalorder %s11, 3
      %p99 = pnand %p97, %p98
      %p100 = pneg %p99
      // Predicated region
      $region9: #{tpu_custom_call.1} parent=5 // pred_check
        _
      $region10: #{tpu_custom_call.1} parent=5 // pred_check_branch
        %102 = sbr.rel (%p99) target = $region12
      $region11: #{tpu_custom_call.1} parent=5 // pred_region
        %s103 = ssub.s32 %s11, 1
      $region12: #{tpu_custom_call.1} parent=5 // pred_fallthru
        _
      %p104 = scmp.lt.s32.totalorder %s11, 2
      // Predicated region
      $region13: #{tpu_custom_call.1} parent=5 // pred_check
        %p105 = pneg %p104
      $region14: #{tpu_custom_call.1} parent=5 // pred_check_branch
        %107 = sbr.rel (%p105) target = $region16
      $region15: #{tpu_custom_call.1} parent=5 // pred_region
        // Predicated region
        $region17: #{tpu_custom_call.1} parent=15 // pred_check
          %p108 = pneg %p31
        $region18: #{tpu_custom_call.1} parent=15 // pred_check_branch
          %110 = sbr.rel (%p108) target = $region20
        $region19: #{tpu_custom_call.1} parent=15 // pred_region
          %p111 = scmp.lt.s32.totalorder %s11, 1
          %s112 = scalar_select %p111, %s11, 1
          %s113 = smul.addr %s112, 8
          %s114 = scalar_lea.vmem %s0, %s113
        $region20: #{tpu_custom_call.1} parent=15 // pred_fallthru
          _
        // Predicated region
        $region21: #{tpu_custom_call.1} parent=15 // pred_check
          %p115 = pneg %p57
        $region22: #{tpu_custom_call.1} parent=15 // pred_check_branch
          %117 = sbr.rel (%p115) target = $region24
        $region23: #{tpu_custom_call.1} parent=15 // pred_region
          %p118 = scmp.lt.s32.totalorder %s11, 1
          %s119 = scalar_select %p118, %s11, 1
          %s120 = smul.addr %s119, 8
          %s121 = scalar_lea.vmem %s1, %s120
        $region24: #{tpu_custom_call.1} parent=15 // pred_fallthru
          _
      $region16: #{tpu_custom_call.1} parent=5 // pred_fallthru
        _
      %p122 = scmp.le.s32.totalorder 1, %s11
      %p123 = scmp.lt.s32.totalorder %s11, 3
      %p124 = pnand %p122, %p123
      %p125 = pneg %p124
      // Predicated region
      $region25: #{tpu_custom_call.1} parent=5 // pred_check
        _
      $region26: #{tpu_custom_call.1} parent=5 // pred_check_branch
        %127 = sbr.rel (%p124) target = $region28
      $region27: #{tpu_custom_call.1} parent=5 // pred_region
        %s128 = ssub.s32 %s11, 1
        %p129 = scmp.lt.s32.totalorder %s16, 1
        %s130 = scalar_select %p129, %s16, 1
        %s131 = smul.addr %s130, 8
        %s132 = scalar_lea.vmem %s0, %s131
        %p133 = pneg %p37
        %p134 = pneg %p34
        %p135 = scmp.lt.s32.totalorder %s16, 1
        %s136 = scalar_select %p135, %s16, 1
        %s137 = smul.addr %s136, 8
        %s138 = scalar_lea.vmem %s1, %s137
        %p139 = pneg %p63
        %p140 = pneg %p60
        %p141 = pneg %p89
        %p142 = pneg %p86
        %s143 = sand.u32 %s76, 1
        %s144 = scalar_lea.sflag [#allocation3], %s143
        %s145 = sand.u32 %s76, 1
        %s146 = smul.addr %s145, 8
        %s147 = scalar_lea.vmem [#allocation2], %s146
        %p148 = scmp.lt.s32.totalorder %s16, 1
        %s149 = scalar_select %p148, %s16, 1
        %s150 = smul.addr %s149, 8
        %s151 = scalar_lea.vmem %s0, %s150
        %p152 = scmp.lt.s32.totalorder %s16, 1
        %s153 = scalar_select %p152, %s16, 1
        %s154 = smul.addr %s153, 8
        %s155 = scalar_lea.vmem %s1, %s154
        %v156 = vld [vmem:[%s151] sm:$0xff]
        %v157 = vld [vmem:[%s155] sm:$0xff]
        %vm158 = vcmask 261120
        %v159 = vsel %vm158, %v156, -inf
        %160 = vmax.xlane.f32.xlu0 %v159
        %v161 = vpop.xlane.xlu0 %160
        %v162 = vsub.f32 %v156, %v161
        %v163 = vmul.f32 %v162, 1.442695
        %v164 = vpow.pop %v163
        %v165 = vsel %vm158, %v164, 0.0
        %166 = vadd.xlane.f32.xlu0 %v165
        %v167 = vpop.xlane.xlu0 %166
        %v168 = vlog2.pop %v167
        %v169 = vmul.f32 %v168, 0.6931472
        %v170 = vlaneseq
        %v171 = vand.u32 %v170, 127
        %172 = vset.pattern.permute.xlu0 0
        %173 = vperm.xlu0 %172, %v157
        %v174 = vpop.permute.xlu0 %173
        %vm175 = vcmp.eq.s32.totalorder %v171, %v174
        %v176 = vsel %vm175, %v162, 0.0
        %v177 = vsel %vm158, %v176, 0.0
        %178 = vadd.xlane.f32.xlu0 %v177
        %v179 = vpop.xlane.xlu0 %178
        %v180 = vsub.f32 %v169, %v179
        %s181 = smul.u32 %s16, 8
        %v182 = vlaneseq
        %v183 = vshrl.u32 %v182, 7
        %v184 = vstv %s181
        %v185 = vadd.s32 %v184, %v183
        %vm186 = vcmp.lt.s32.totalorder %v185, 16
        %vm187 = vcmp.ne.s32.totalorder %v157, 4294967196
        %vm188 = vmand %vm186, %vm187
        %v189 = vsel %vm188, %v180, 0.0
        %vm190 = vcmask 7168
        %v191 = vsel %vm190, %v189, 0.0
        %192 = vadd.xlane.f32.xlu0 %v191
        %v193 = vpop.xlane.xlu0 %192
        %v194 = vrot.slane %v193, 4
        %v195 = vadd.f32 %v193, %v194
        %v196 = vrot.slane %v195, 2
        %v197 = vadd.f32 %v195, %v196
        %v198 = vrot.slane %v197, 1
        %v199 = vadd.f32 %v197, %v198
        %s200 = vtos %v199
        %vm201 = vcmp.eq.s32.totalorder %v183, 0
        %vm202 = vcmp.eq.s32.totalorder %v171, 0
        %vm203 = vmand %vm201, %vm202
        %v204 = vstv %s200
        %v205 = vsel %vm203, %v204, 0.0
        %206 = vst [vmem:[%s147] sm:$0xff] %v205
        %s207 = sand.u32 %s76, 1
        %s208 = scalar_lea.sflag [#allocation3], %s207
        %s209 = sand.u32 %s76, 1
        %s210 = smul.addr %s209, 8
        %s211 = scalar_lea.vmem [#allocation2], %s210
        // Predicated region
        $region29: #{tpu_custom_call.1} parent=27 // pred_check
          %p212 = pneg %p86
        $region30: #{tpu_custom_call.1} parent=27 // pred_check_branch
          %214 = sbr.rel (%p212) target = $region32
        $region31: #{tpu_custom_call.1} parent=27 // pred_region
          %216 = vsyncadd %s208, 0
          %s217 = smul.addr %s16, 8
          %s218 = scalar_lea.hbm %s2, %s217
          %s220 = sshll.u32 %s211, 4
          %s221 = int_to_ptr.vmem [resolvable:$true] %s220
          %s222 = sshll.u32 %s218, 4
          %s223 = int_to_ptr.hbm [resolvable:$true] %s222
          %225 = dma.vmem_to_hbm [thread:$0]  %s221, 128, %s223, %s208
        $region32: #{tpu_custom_call.1} parent=27 // pred_fallthru
          _
      $region28: #{tpu_custom_call.1} parent=5 // pred_fallthru
        _
      %p226 = scmp.le.s32.totalorder 2, %s11
      // Predicated region
      $region33: #{tpu_custom_call.1} parent=5 // pred_check
        %p227 = pneg %p226
      $region34: #{tpu_custom_call.1} parent=5 // pred_check_branch
        %229 = sbr.rel (%p227) target = $region36
      $region35: #{tpu_custom_call.1} parent=5 // pred_region
        %s230 = ssub.s32 %s11, 2
        // Predicated region
        $region37: #{tpu_custom_call.1} parent=35 // pred_check
          %p231 = pneg %p92
        $region38: #{tpu_custom_call.1} parent=35 // pred_check_branch
          %233 = sbr.rel (%p231) target = $region40
        $region39: #{tpu_custom_call.1} parent=35 // pred_region
          %s234 = sand.u32 %s77, 1
          %s235 = scalar_lea.sflag [#allocation3], %s234
          %s236 = sand.u32 %s77, 1
          %s237 = smul.addr %s236, 8
          %s238 = scalar_lea.vmem [#allocation2], %s237
          %240 = dma.done %s235, 128
        $region40: #{tpu_custom_call.1} parent=35 // pred_fallthru
          _
      $region36: #{tpu_custom_call.1} parent=5 // pred_fallthru
        _
    $region6: #{tpu_custom_call.1} parent=1 // loop_footer
      %s15 = sadd.s32 1, %s11
    $region7: #{tpu_custom_call.1} parent=1 // loop_footer_branch
      %10 = sbr.rel target = $region3
    $region8: #{tpu_custom_call.1} parent=1 // loop_exit
      _
    %241 = vsyncpa [#allocation3], 1
    %s242 = scalar_lea.sflag [#allocation3], 1
    %243 = vsyncpa %s242, 1

</llo_original>
